<compile_context>
chip_gen: v6e
topology: v6e:2x2x1
jax: 0.10.0
libtpu: 0.0.40
codegen_flags: <defaults>
</compile_context>

<pallas_src>
import functools

import jax
import jax.numpy as jnp
from jax.experimental import pallas as pl
from jax.experimental.pallas import tpu as pltpu

_EPS = 1e-5


def _ln_withbias_kernel(x_ref, w_ref, b_ref, o_ref):
    x = x_ref[...].astype(jnp.float32)               # (C, T)
    mu = jnp.mean(x, axis=0, keepdims=True)          # (1, T)  sublane reduce
    msq = jnp.mean(x * x, axis=0, keepdims=True)     # single pass over x
    var = jnp.maximum(msq - mu * mu, 0.0)            # clamp: guards cancellation
    inv = jax.lax.rsqrt(var + _EPS)
    w = w_ref[...].astype(jnp.float32)               # (C, 1) broadcasts over lanes
    b = b_ref[...].astype(jnp.float32)               # (C, 1)
    o_ref[...] = ((x - mu) * inv * w + b).astype(o_ref.dtype)


def _ln_biasfree_kernel(x_ref, w_ref, o_ref):
    x = x_ref[...].astype(jnp.float32)               # (C, T)
    mu = jnp.mean(x, axis=0, keepdims=True)
    msq = jnp.mean(x * x, axis=0, keepdims=True)
    var = jnp.maximum(msq - mu * mu, 0.0)            # var about mean, unbiased=False
    inv = jax.lax.rsqrt(var + _EPS)
    w = w_ref[...].astype(jnp.float32)               # (C, 1)
    # BiasFree: divide the ORIGINAL x (not mean-centered) by sqrt(var + eps).
    o_ref[...] = (x * inv * w).astype(o_ref.dtype)


def _tpu_budget():
    """(tile-size target bytes, vmem_limit_bytes) per TPU generation."""
    kind = ""
    try:
        kind = jax.devices()[0].device_kind.lower()
    except Exception:  # pragma: no cover - defensive; defaults below are safe
        pass
    if "v7" in kind:
        # v7x: 64 MiB physical VMEM / TC, 3.2 TB/s HBM -> moderate tiles.
        return 4 * 1024 * 1024, 48 * 1024 * 1024
    # v5e / v6e: 128 MiB physical VMEM, HBM-roofline bound -> bigger tiles.
    # Explicit vmem_limit also protects against v5e's 16 MiB scoped default.
    return 8 * 1024 * 1024, 80 * 1024 * 1024


def _choose_tile_hw(hw, c, batch, itemsize, target_bytes):
    """Spatial (lane) tile: a multiple of 128 (or the full extent), ~target_bytes."""
    budget_lanes = max(128, int(target_bytes) // max(1, c * itemsize))
    if hw <= budget_lanes:
        tile = hw                            # full extent is always a legal block dim
    else:
        tile = max(128, (budget_lanes // 128) * 128)

    # Occupancy guard (v7x: 2 TensorCores share the 'parallel' grid axes).
    # Prefer an even total step count >= 4, but never shrink below 512 lanes
    # just to manufacture extra steps -- per-step amortization matters more.
    def n_steps(t):
        return batch * pl.cdiv(hw, t)

    if n_steps(tile) < 4 or n_steps(tile) % 2:
        cand = tile
        while cand > 512:
            cand = max(512, ((cand // 2) // 128) * 128)
            if n_steps(cand) >= 4 and n_steps(cand) % 2 == 0:
                tile = cand
                break
    return tile


@functools.partial(jax.jit, static_argnames=("layernorm_type", "tile_hw"))
def layernorm_nchw(x, weight, bias=None, *, layernorm_type="WithBias", tile_hw=None):
    """x: (B, C, H, W).  weight/bias: (C,).  Returns (B, C, H, W)."""
    B, C, H, W = x.shape
    HW = H * W
    x3 = x.reshape(B, C, HW)                 # contiguous reshape: no HBM transpose

    target_bytes, vmem_limit = _tpu_budget()
    itemsize = jnp.dtype(x.dtype).itemsize
    if tile_hw is None:
        tile_hw = _choose_tile_hw(HW, C, B, itemsize, target_bytes)
    n_hw = pl.cdiv(HW, tile_hw)              # ragged tail handled by boundary masking
    grid = (B, n_hw)

    # Kernel sees (C, tile_hw): batch dim squeezed, C on sublanes, HW on lanes.
    x_spec = pl.BlockSpec((pl.Squeezed(), C, tile_hw), lambda b, j: (b, 0, j))
    o_spec = pl.BlockSpec((pl.Squeezed(), C, tile_hw), lambda b, j: (b, 0, j))
    p_spec = pl.BlockSpec((C, 1), lambda b, j: (0, 0))   # resident params

    cparams = pltpu.CompilerParams(
        dimension_semantics=("parallel", "parallel"),
        vmem_limit_bytes=vmem_limit,
    )

    w2 = weight.reshape(C, 1)

    if layernorm_type == "BiasFree":
        out3 = pl.pallas_call(
            _ln_biasfree_kernel,
            out_shape=jax.ShapeDtypeStruct((B, C, HW), x.dtype),
            grid_spec=pltpu.PrefetchScalarGridSpec(
                num_scalar_prefetch=0,
                grid=grid,
                in_specs=[x_spec, p_spec],
                out_specs=o_spec,
            ),
            compiler_params=cparams,
        )(x3, w2)
    else:
        b2 = bias.reshape(C, 1)
        out3 = pl.pallas_call(
            _ln_withbias_kernel,
            out_shape=jax.ShapeDtypeStruct((B, C, HW), x.dtype),
            grid_spec=pltpu.PrefetchScalarGridSpec(
                num_scalar_prefetch=0,
                grid=grid,
                in_specs=[x_spec, p_spec, p_spec],
                out_specs=o_spec,
            ),
            compiler_params=cparams,
        )(x3, w2, b2)

    return out3.reshape(B, C, H, W)          # contiguous reshape: no HBM transpose


def _reference_layernorm_nchw(x, weight, bias, layernorm_type):
    # pure-JAX reference mirroring the PyTorch module
    x3d = jnp.transpose(x, (0, 2, 3, 1))     # b h w c
    mu = jnp.mean(x3d, axis=-1, keepdims=True)
    var = jnp.mean((x3d - mu) ** 2, axis=-1, keepdims=True)
    if layernorm_type == "BiasFree":
        y = x3d / jnp.sqrt(var + _EPS) * weight
    else:
        y = (x3d - mu) / jnp.sqrt(var + _EPS) * weight + bias
    return jnp.transpose(y, (0, 3, 1, 2))


if __name__ == "__main__":
    key = jax.random.PRNGKey(0)
    k1, k2 = jax.random.split(key)

    # --- Shape 1: B=2, C=32, 16x16 (lane-dense, one spatial tile per batch) ---
    B, C, H, W = 2, 32, 16, 16
    x = jax.random.normal(k1, (B, C, H, W), dtype=jnp.float32)
    # Deterministic parameter init matching nn.Module __init__: ones / zeros.
    weight = jnp.ones((C,), dtype=jnp.float32)
    bias = jnp.zeros((C,), dtype=jnp.float32)

    out_wb = layernorm_nchw(x, weight, bias, layernorm_type="WithBias")
    out_bf = layernorm_nchw(x, weight, layernorm_type="BiasFree")
    jax.block_until_ready((out_wb, out_bf))

    ref_wb = _reference_layernorm_nchw(x, weight, bias, "WithBias")
    ref_bf = _reference_layernorm_nchw(x, weight, bias, "BiasFree")
    assert out_wb.shape == (B, C, H, W)
    assert jnp.allclose(out_wb, ref_wb, atol=1e-5, rtol=1e-5)
    assert jnp.allclose(out_bf, ref_bf, atol=1e-5, rtol=1e-5)

    # --- Shape 2: ragged spatial extent (H*W = 480 not divisible by the 128-lane
    #     tile) exercising the cdiv grid + masked boundary tile, with non-trivial
    #     weight/bias. ---
    B2, C2, H2, W2 = 2, 48, 24, 20
    x2 = jax.random.normal(k2, (B2, C2, H2, W2), dtype=jnp.float32)
    w2 = jax.random.normal(jax.random.PRNGKey(1), (C2,), dtype=jnp.float32)
    b2 = jax.random.normal(jax.random.PRNGKey(2), (C2,), dtype=jnp.float32)
    out2 = layernorm_nchw(x2, w2, b2, layernorm_type="WithBias", tile_hw=128)
    jax.block_until_ready(out2)
    ref2 = _reference_layernorm_nchw(x2, w2, b2, "WithBias")
    assert jnp.allclose(out2, ref2, atol=1e-4, rtol=1e-4)

    # --- Shape 3: larger spatial extent exercising the auto tile chooser /
    #     occupancy guard path end-to-end. ---
    B3, C3, H3, W3 = 1, 32, 64, 64
    x3 = jax.random.normal(jax.random.PRNGKey(3), (B3, C3, H3, W3), dtype=jnp.float32)
    w3 = jax.random.normal(jax.random.PRNGKey(4), (C3,), dtype=jnp.float32)
    out3 = layernorm_nchw(x3, w3, layernorm_type="BiasFree")
    jax.block_until_ready(out3)
    ref3 = _reference_layernorm_nchw(x3, w3, None, "BiasFree")
    assert jnp.allclose(out3, ref3, atol=1e-4, rtol=1e-4)

    print("KERNEL_OK")
</pallas_src>

<mosaic_0001>
module attributes {stable_mosaic.version = 11 : i64} {
  func.func @_ln_withbias_kernel(%arg0: i32, %arg1: i32, %arg2: memref<1x32x256xf32, #tpu.memory_space<vmem>>, %arg3: memref<32x1xf32, #tpu.memory_space<vmem>>, %arg4: memref<32x1xf32, #tpu.memory_space<vmem>>, %arg5: memref<1x32x256xf32, #tpu.memory_space<vmem>>) attributes {dimension_semantics = [#tpu.dimension_semantics<parallel>, #tpu.dimension_semantics<parallel>], iteration_bounds = array<i64: 2, 1>, scalar_prefetch = 0 : i64, scratch_operands = 0 : i64, tpu.core_type = #tpu.core_type<tc>, window_params = [{transform_indices = @transform_0, window_bounds = array<i64: 1, 32, 256>}, {pipeline_mode = #tpu.pipeline_mode<synchronous>, transform_indices = @transform_1, window_bounds = array<i64: 32, 1>}, {pipeline_mode = #tpu.pipeline_mode<synchronous>, transform_indices = @transform_2, window_bounds = array<i64: 32, 1>}, {transform_indices = @transform_3, window_bounds = array<i64: 1, 32, 256>}]} {
    %c0 = arith.constant 0 : index
    %c0_0 = arith.constant 0 : index
    %c0_1 = arith.constant 0 : index
    %0 = vector.load %arg2[%c0, %c0_0, %c0_1] : memref<1x32x256xf32, #tpu.memory_space<vmem>>, vector<1x32x256xf32>
    %1 = vector.shape_cast %0 : vector<1x32x256xf32> to vector<32x256xf32>
    %cst = arith.constant dense<0.000000e+00> : vector<256xf32>
    %2 = vector.multi_reduction <add>, %1, %cst [0] : vector<32x256xf32> to vector<256xf32>
    %3 = vector.shape_cast %2 : vector<256xf32> to vector<1x256xf32>
    %cst_2 = arith.constant 3.200000e+01 : f32
    %4 = vector.broadcast %cst_2 : f32 to vector<1x256xf32>
    %5 = arith.divf %3, %4 : vector<1x256xf32>
    %6 = arith.mulf %1, %1 : vector<32x256xf32>
    %cst_3 = arith.constant dense<0.000000e+00> : vector<256xf32>
    %7 = vector.multi_reduction <add>, %6, %cst_3 [0] : vector<32x256xf32> to vector<256xf32>
    %8 = vector.shape_cast %7 : vector<256xf32> to vector<1x256xf32>
    %cst_4 = arith.constant 3.200000e+01 : f32
    %9 = vector.broadcast %cst_4 : f32 to vector<1x256xf32>
    %10 = arith.divf %8, %9 : vector<1x256xf32>
    %11 = arith.mulf %5, %5 : vector<1x256xf32>
    %12 = arith.subf %10, %11 : vector<1x256xf32>
    %cst_5 = arith.constant 0.000000e+00 : f32
    %13 = vector.broadcast %cst_5 : f32 to vector<1x256xf32>
    %14 = arith.maximumf %12, %13 : vector<1x256xf32>
    %cst_6 = arith.constant 9.99999974E-6 : f32
    %15 = vector.broadcast %cst_6 : f32 to vector<1x256xf32>
    %16 = arith.addf %14, %15 : vector<1x256xf32>
    %17 = math.rsqrt %16 : vector<1x256xf32>
    %c0_7 = arith.constant 0 : index
    %c0_8 = arith.constant 0 : index
    %18 = vector.load %arg3[%c0_7, %c0_8] : memref<32x1xf32, #tpu.memory_space<vmem>>, vector<32x1xf32>
    %c0_9 = arith.constant 0 : index
    %c0_10 = arith.constant 0 : index
    %19 = vector.load %arg4[%c0_9, %c0_10] : memref<32x1xf32, #tpu.memory_space<vmem>>, vector<32x1xf32>
    %20 = vector.broadcast %5 : vector<1x256xf32> to vector<32x256xf32>
    %21 = arith.subf %1, %20 : vector<32x256xf32>
    %22 = vector.broadcast %17 : vector<1x256xf32> to vector<32x256xf32>
    %23 = arith.mulf %21, %22 : vector<32x256xf32>
    %24 = vector.broadcast %18 : vector<32x1xf32> to vector<32x256xf32>
    %25 = arith.mulf %23, %24 : vector<32x256xf32>
    %26 = vector.broadcast %19 : vector<32x1xf32> to vector<32x256xf32>
    %27 = arith.addf %25, %26 : vector<32x256xf32>
    %c0_11 = arith.constant 0 : index
    %c0_12 = arith.constant 0 : index
    %c0_13 = arith.constant 0 : index
    %28 = vector.load %arg5[%c0_11, %c0_12, %c0_13] : memref<1x32x256xf32, #tpu.memory_space<vmem>>, vector<1x32x256xf32>
    %29 = vector.shape_cast %28 : vector<1x32x256xf32> to vector<32x256xf32>
    %30 = vector.shape_cast %27 : vector<32x256xf32> to vector<1x32x256xf32>
    tpu.vector_store %arg5[%c0_11, %c0_12, %c0_13], %30 {strides = array<i32>} : memref<1x32x256xf32, #tpu.memory_space<vmem>>, vector<1x32x256xf32>,
    return
  }
  func.func @transform_0(%arg0: i32, %arg1: i32) -> (i32, i32, i32) {
    %c0_i32 = arith.constant 0 : i32
    %c0_i32_0 = arith.constant 0 : i32
    return %arg0, %c0_i32, %arg1 : i32, i32, i32
  }
  func.func @transform_1(%arg0: i32, %arg1: i32) -> (i32, i32) {
    %c0_i32 = arith.constant 0 : i32
    %c0_i32_0 = arith.constant 0 : i32
    %c0_i32_1 = arith.constant 0 : i32
    return %c0_i32, %c0_i32_0 : i32, i32
  }
  func.func @transform_2(%arg0: i32, %arg1: i32) -> (i32, i32) {
    %c0_i32 = arith.constant 0 : i32
    %c0_i32_0 = arith.constant 0 : i32
    %c0_i32_1 = arith.constant 0 : i32
    return %c0_i32, %c0_i32_0 : i32, i32
  }
  func.func @transform_3(%arg0: i32, %arg1: i32) -> (i32, i32, i32) {
    %c0_i32 = arith.constant 0 : i32
    %c0_i32_0 = arith.constant 0 : i32
    return %arg0, %c0_i32, %arg1 : i32, i32, i32
  }
}

</mosaic_0001>

<llo_original>
// kernel: layernorm_nchw.1
$region0: #{layernorm_nchw.1}
  #allocation0 [shape = 'u32[]', space=smem, size = 0x4, offset = 0x4, fixed_abs, tag = 'smem constant byte address 0x4 - core index']
  #allocation1 [shape = 'u32[144,128]{1,0:T(1,128)}', space=vmem, size = 0x12000, scoped, tag = 'internal scratch']
  %s0 = inlined_call_operand.vmem [shape: f32[2,32,256], index: 0, kind: input, shape index: {}]
  %s1 = inlined_call_operand.vmem [shape: f32[32,1], index: 1, kind: input, shape index: {}]
  %s2 = inlined_call_operand.vmem [shape: f32[32,1], index: 2, kind: input, shape index: {}]
  %s3 = inlined_call_operand.vmem [shape: f32[2,32,256], index: 3, kind: output, shape index: {}]
  %s4 = sld [smem:[#allocation0]]
  $region45: #{layernorm_nchw.1} parent=0
    _
  %s6 = ssub.s32 1, %s4
  %s7 = scalar_select 0, %s6, %s4
  loop: start=0, step=1, limit=4
  $region2: #{layernorm_nchw.1} parent=0 // loop_pre_header
    _
  $region3: #{layernorm_nchw.1} parent=0 // loop_header
    %s9 = sphi 0, %s13
    %p10 = scmp.ge.s32.totalorder %s9, 4
    %s16 = sphi 0, %s28
    %s17 = sphi 0, %s24
    %s18 = sphi 0, %s16
    %s19 = sphi 0, %s17
    %s20 = sphi 0, %s18
    %s21 = sphi 0, %s19
    %s33 = sphi 0, %s35
    %s36 = sphi 0, %s33
    %s37 = sphi 0, %s36
    %s53 = sphi 0, %s37
    %s57 = sphi 0, %s57
    %s59 = sphi 0, %s57
    %s60 = sphi 0, %s59
    %s74 = sphi 0, %s60
    %s78 = sphi 0, %s78
    %s80 = sphi 0, %s78
    %s81 = sphi 0, %s80
    %s95 = sphi 0, %s81
    %s103 = sphi 0, %s105
    %s106 = sphi 0, %s103
    %s107 = sphi 0, %s106
    %s123 = sphi 0, %s107
  $region4: #{layernorm_nchw.1} parent=0 // loop_header_branch
    %12 = sbr.rel (%p10) target = $region8
  $region5: #{layernorm_nchw.1} parent=0 // loop_body
    %s14 = ssub.s32 %s9, 1
    %s15 = ssub.s32 %s9, 2
    %s22 = sadd.s32 1, %s17
    %p23 = scmp.ge.s32.totalorder %s22, 1
    %s24 = scalar_select %p23, 0, %s22
    %s25 = sadd.s32 1, %s16
    %s26 = scalar_select %p23, %s25, %s16
    %p27 = scmp.ge.s32.totalorder %s26, 2
    %s28 = scalar_select %p27, 0, %s26
    %s29 = ssub.s32 %s16, %s28
    %s30 = ssub.s32 %s17, %s24
    %s31 = sor.u32 %s29, %s30
    %p32 = scmp.eq.s32.totalorder %s31, 0
    %s34 = sadd.s32 %s33, 1
    %s35 = scalar_select %p32, %s33, %s34
    %p38 = pneg %p32
    %p39 = scmp.eq.s32.totalorder %s9, 1
    %p40 = por %p38, %p39
    %p41 = scmp.ne.s32.totalorder %s33, %s36
    %p42 = scmp.eq.s32.totalorder %s9, 0
    %p43 = por %p41, %p42
    %p44 = scmp.ne.s32.totalorder %s33, %s36
    %p45 = scmp.eq.s32.totalorder %s14, 1
    %p46 = por %p44, %p45
    %p47 = scmp.ne.s32.totalorder %s36, %s37
    %p48 = scmp.eq.s32.totalorder %s14, 0
    %p49 = por %p47, %p48
    %p50 = scmp.ne.s32.totalorder %s36, %s37
    %p51 = scmp.eq.s32.totalorder %s15, 1
    %p52 = por %p50, %p51
    %p54 = scmp.ne.s32.totalorder %s37, %s53
    %p55 = scmp.eq.s32.totalorder %s15, 0
    %p56 = por %p54, %p55
    %s58 = sadd.s32 %s57, 1
    %p61 = scmp.eq.s32.totalorder %s9, 1
    %p62 = scmp.ne.s32.totalorder %s57, %s59
    %p63 = scmp.eq.s32.totalorder %s9, 0
    %p64 = por %p62, %p63
    %p65 = scmp.ne.s32.totalorder %s57, %s59
    %p66 = scmp.eq.s32.totalorder %s14, 1
    %p67 = por %p65, %p66
    %p68 = scmp.ne.s32.totalorder %s59, %s60
    %p69 = scmp.eq.s32.totalorder %s14, 0
    %p70 = por %p68, %p69
    %p71 = scmp.ne.s32.totalorder %s59, %s60
    %p72 = scmp.eq.s32.totalorder %s15, 1
    %p73 = por %p71, %p72
    %p75 = scmp.ne.s32.totalorder %s60, %s74
    %p76 = scmp.eq.s32.totalorder %s15, 0
    %p77 = por %p75, %p76
    %s79 = sadd.s32 %s78, 1
    %p82 = scmp.eq.s32.totalorder %s9, 1
    %p83 = scmp.ne.s32.totalorder %s78, %s80
    %p84 = scmp.eq.s32.totalorder %s9, 0
    %p85 = por %p83, %p84
    %p86 = scmp.ne.s32.totalorder %s78, %s80
    %p87 = scmp.eq.s32.totalorder %s14, 1
    %p88 = por %p86, %p87
    %p89 = scmp.ne.s32.totalorder %s80, %s81
    %p90 = scmp.eq.s32.totalorder %s14, 0
    %p91 = por %p89, %p90
    %p92 = scmp.ne.s32.totalorder %s80, %s81
    %p93 = scmp.eq.s32.totalorder %s15, 1
    %p94 = por %p92, %p93
    %p96 = scmp.ne.s32.totalorder %s81, %s95
    %p97 = scmp.eq.s32.totalorder %s15, 0
    %p98 = por %p96, %p97
    %s99 = ssub.s32 %s16, %s28
    %s100 = ssub.s32 %s17, %s24
    %s101 = sor.u32 %s99, %s100
    %p102 = scmp.eq.s32.totalorder %s101, 0
    %s104 = sadd.s32 %s103, 1
    %s105 = scalar_select %p102, %s103, %s104
    %p108 = pneg %p102
    %p109 = scmp.eq.s32.totalorder %s9, 1
    %p110 = por %p108, %p109
    %p111 = scmp.ne.s32.totalorder %s103, %s106
    %p112 = scmp.eq.s32.totalorder %s9, 0
    %p113 = por %p111, %p112
    %p114 = scmp.ne.s32.totalorder %s103, %s106
    %p115 = scmp.eq.s32.totalorder %s14, 1
    %p116 = por %p114, %p115
    %p117 = scmp.ne.s32.totalorder %s106, %s107
    %p118 = scmp.eq.s32.totalorder %s14, 0
    %p119 = por %p117, %p118
    %p120 = scmp.ne.s32.totalorder %s106, %s107
    %p121 = scmp.eq.s32.totalorder %s15, 1
    %p122 = por %p120, %p121
    %p124 = scmp.ne.s32.totalorder %s107, %s123
    %p125 = scmp.eq.s32.totalorder %s15, 0
    %p126 = por %p124, %p125
    %p127 = scmp.le.s32.totalorder 1, %s9
    %p128 = scmp.lt.s32.totalorder %s9, 3
    %p129 = pnand %p127, %p128
    %p130 = pneg %p129
    // Predicated region
    $region9: #{layernorm_nchw.1} parent=5 // pred_check
      _
    $region10: #{layernorm_nchw.1} parent=5 // pred_check_branch
      %132 = sbr.rel (%p129) target = $region12
    $region11: #{layernorm_nchw.1} parent=5 // pred_region
      %s133 = ssub.s32 %s9, 1
      // Predicated region
      $region13: #{layernorm_nchw.1} parent=11 // pred_check
        %p134 = pneg %p70
      $region14: #{layernorm_nchw.1} parent=11 // pred_check_branch
        %136 = sbr.rel (%p134) target = $region16
      $region15: #{layernorm_nchw.1} parent=11 // pred_region
        _
      $region16: #{layernorm_nchw.1} parent=11 // pred_fallthru
        _
      // Predicated region
      $region17: #{layernorm_nchw.1} parent=11 // pred_check
        %p137 = pneg %p91
      $region18: #{layernorm_nchw.1} parent=11 // pred_check_branch
        %139 = sbr.rel (%p137) target = $region20
      $region19: #{layernorm_nchw.1} parent=11 // pred_region
        _
      $region20: #{layernorm_nchw.1} parent=11 // pred_fallthru
        _
    $region12: #{layernorm_nchw.1} parent=5 // pred_fallthru
      _
    %p140 = scmp.lt.s32.totalorder %s9, 2
    // Predicated region
    $region21: #{layernorm_nchw.1} parent=5 // pred_check
      %p141 = pneg %p140
    $region22: #{layernorm_nchw.1} parent=5 // pred_check_branch
      %143 = sbr.rel (%p141) target = $region24
    $region23: #{layernorm_nchw.1} parent=5 // pred_region
      // Predicated region
      $region25: #{layernorm_nchw.1} parent=23 // pred_check
        %p144 = pneg %p43
      $region26: #{layernorm_nchw.1} parent=23 // pred_check_branch
        %146 = sbr.rel (%p144) target = $region28
      $region27: #{layernorm_nchw.1} parent=23 // pred_region
        %s147 = smul.u32 2, %s17
        %p148 = scmp.lt.s32.totalorder %s16, 1
        %s149 = scalar_select %p148, %s16, 1
        %p150 = scmp.lt.s32.totalorder %s147, 1
        %s151 = scalar_select %p150, %s147, 1
        %s152 = smul.addr %s149, 8
        %s153 = sadd.s32 %s151, %s152
        %s154 = smul.addr %s153, 8
        %s155 = scalar_lea.vmem %s0, %s154
        %s156 = smul.u32 2, %s17
      $region28: #{layernorm_nchw.1} parent=23 // pred_fallthru
        _
    $region24: #{layernorm_nchw.1} parent=5 // pred_fallthru
      _
    %p157 = scmp.le.s32.totalorder 1, %s9
    %p158 = scmp.lt.s32.totalorder %s9, 3
    %p159 = pnand %p157, %p158
    %p160 = pneg %p159
    // Predicated region
    $region29: #{layernorm_nchw.1} parent=5 // pred_check
      _
    $region30: #{layernorm_nchw.1} parent=5 // pred_check_branch
      %162 = sbr.rel (%p159) target = $region32
    $region31: #{layernorm_nchw.1} parent=5 // pred_region
      %s163 = ssub.s32 %s9, 1
      %s164 = smul.u32 2, %s19
      %p165 = scmp.lt.s32.totalorder %s18, 1
      %s166 = scalar_select %p165, %s18, 1
      %p167 = scmp.lt.s32.totalorder %s164, 1
      %s168 = scalar_select %p167, %s164, 1
      %s169 = smul.addr %s166, 8
      %s170 = sadd.s32 %s168, %s169
      %s171 = smul.addr %s170, 8
      %s172 = scalar_lea.vmem %s0, %s171
      %p173 = pneg %p49
      %p174 = pneg %p46
      %p175 = pneg %p70
      %p176 = pneg %p67
      %p177 = pneg %p91
      %p178 = pneg %p88
      %p179 = pneg %p119
      %p180 = pneg %p116
      %s181 = smul.u32 2, %s19
      %p182 = scmp.lt.s32.totalorder %s18, 1
      %s183 = scalar_select %p182, %s18, 1
      %p184 = scmp.lt.s32.totalorder %s181, 1
      %s185 = scalar_select %p184, %s181, 1
      %s186 = smul.addr %s183, 8
      %s187 = sadd.s32 %s185, %s186
      %s188 = smul.addr %s187, 8
      %s189 = scalar_lea.vmem %s3, %s188
      %s190 = smul.u32 2, %s19
      %p191 = scmp.lt.s32.totalorder %s18, 1
      %s192 = scalar_select %p191, %s18, 1
      %p193 = scmp.lt.s32.totalorder %s190, 1
      %s194 = scalar_select %p193, %s190, 1
      %s195 = smul.addr %s192, 8
      %s196 = sadd.s32 %s194, %s195
      %s197 = smul.addr %s196, 8
      %s198 = scalar_lea.vmem %s0, %s197
      %s199 = smul.u32 2, %s19
      %s200 = smul.u32 2, %s19
      %p201 = scmp.lt.s32.totalorder %s18, 1
      %s202 = scalar_select %p201, %s18, 1
      %p203 = scmp.lt.s32.totalorder %s200, 1
      %s204 = scalar_select %p203, %s200, 1
      %s205 = smul.addr %s202, 8
      %s206 = sadd.s32 %s204, %s205
      %s207 = smul.addr %s206, 8
      %s208 = scalar_lea.vmem %s3, %s207
      %s209 = smul.u32 2, %s19
      %v210 = vld [vmem:[%s198] sm:$0xff]
      %v211 = vld [vmem:[%s198 + $0x8] sm:$0xff]
      %v212 = vld [vmem:[%s198 + $0x10] sm:$0xff]
      %v213 = vld [vmem:[%s198 + $0x18] sm:$0xff]
      %v214 = vld [vmem:[%s198 + $0x20] sm:$0xff]
      %v215 = vld [vmem:[%s198 + $0x28] sm:$0xff]
      %v216 = vld [vmem:[%s198 + $0x30] sm:$0xff]
      %v217 = vld [vmem:[%s198 + $0x38] sm:$0xff]
      %v218 = vadd.f32 %v210, %v212
      %v219 = vadd.f32 %v218, %v214
      %v220 = vadd.f32 %v219, %v216
      %v221 = vrot.slane %v220, 4
      %v222 = vadd.f32 %v220, %v221
      %v223 = vrot.slane %v222, 2
      %v224 = vadd.f32 %v222, %v223
      %v225 = vrot.slane %v224, 1
      %v226 = vadd.f32 %v224, %v225
      %v227 = vadd.f32 %v211, %v213
      %v228 = vadd.f32 %v227, %v215
      %v229 = vadd.f32 %v228, %v217
      %v230 = vrot.slane %v229, 4
      %v231 = vadd.f32 %v229, %v230
      %v232 = vrot.slane %v231, 2
      %v233 = vadd.f32 %v231, %v232
      %v234 = vrot.slane %v233, 1
      %v235 = vadd.f32 %v233, %v234
      %v236 = vrcp.pop 32.0
      %v237 = vmul.f32 %v226, %v236
      %v238 = vmul.f32 %v235, %v236
      %v239 = vmul.f32 %v210, %v210
      %v240 = vmul.f32 %v211, %v211
      %v241 = vmul.f32 %v212, %v212
      %v242 = vmul.f32 %v213, %v213
      %v243 = vmul.f32 %v214, %v214
      %v244 = vmul.f32 %v215, %v215
      %v245 = vmul.f32 %v216, %v216
      %v246 = vmul.f32 %v217, %v217
      %v247 = vadd.f32 %v239, %v241
      %v248 = vadd.f32 %v247, %v243
      %v249 = vadd.f32 %v248, %v245
      %v250 = vrot.slane %v249, 4
      %v251 = vadd.f32 %v249, %v250
      %v252 = vrot.slane %v251, 2
      %v253 = vadd.f32 %v251, %v252
      %v254 = vrot.slane %v253, 1
      %v255 = vadd.f32 %v253, %v254
      %v256 = vadd.f32 %v240, %v242
      %v257 = vadd.f32 %v256, %v244
      %v258 = vadd.f32 %v257, %v246
      %v259 = vrot.slane %v258, 4
      %v260 = vadd.f32 %v258, %v259
      %v261 = vrot.slane %v260, 2
      %v262 = vadd.f32 %v260, %v261
      %v263 = vrot.slane %v262, 1
      %v264 = vadd.f32 %v262, %v263
      %v265 = vmul.f32 %v255, %v236
      %v266 = vmul.f32 %v264, %v236
      %v267 = vmul.f32 %v237, %v237
      %v268 = vmul.f32 %v238, %v238
      %v269 = vsub.f32 %v265, %v267
      %v270 = vsub.f32 %v266, %v268
      %v271 = vmax.f32 %v269, 0.0
      %v272 = vmax.f32 %v270, 0.0
      %v273 = vadd.f32 %v271, 1e-05
      %v274 = vadd.f32 %v272, 1e-05
      %v275 = vrsqrt.pop %v273
      %v276 = vrsqrt.pop %v274
      %v277 = vld [vmem:[%s1] sm:$0xff]
      %v278 = vld [vmem:[%s1 + $0x8] sm:$0xff]
      %v279 = vld [vmem:[%s1 + $0x10] sm:$0xff]
      %v280 = vld [vmem:[%s1 + $0x18] sm:$0xff]
      %v281 = vld [vmem:[%s2] sm:$0xff]
      %v282 = vld [vmem:[%s2 + $0x8] sm:$0xff]
      %v283 = vld [vmem:[%s2 + $0x10] sm:$0xff]
      %v284 = vld [vmem:[%s2 + $0x18] sm:$0xff]
      %v285 = vsub.f32 %v210, %v237
      %v286 = vsub.f32 %v211, %v238
      %v287 = vsub.f32 %v212, %v237
      %v288 = vsub.f32 %v213, %v238
      %v289 = vsub.f32 %v214, %v237
      %v290 = vsub.f32 %v215, %v238
      %v291 = vsub.f32 %v216, %v237
      %v292 = vsub.f32 %v217, %v238
      %v293 = vmul.f32 %v285, %v275
      %v294 = vmul.f32 %v286, %v276
      %v295 = vmul.f32 %v287, %v275
      %v296 = vmul.f32 %v288, %v276
      %v297 = vmul.f32 %v289, %v275
      %v298 = vmul.f32 %v290, %v276
      %v299 = vmul.f32 %v291, %v275
      %v300 = vmul.f32 %v292, %v276
      %302 = vset.pattern.permute.xlu0 0
      %303 = vperm.xlu0 %302, %v277
      %v304 = vpop.permute.xlu0 %303
      %307 = vset.pattern.permute.xlu0 0
      %308 = vperm.xlu0 %307, %v278
      %v309 = vpop.permute.xlu0 %308
      %312 = vset.pattern.permute.xlu0 0
      %313 = vperm.xlu0 %312, %v279
      %v314 = vpop.permute.xlu0 %313
      %317 = vset.pattern.permute.xlu0 0
      %318 = vperm.xlu0 %317, %v280
      %v319 = vpop.permute.xlu0 %318
      %v321 = vmul.f32 %v293, %v304
      %v322 = vmul.f32 %v294, %v304
      %v323 = vmul.f32 %v295, %v309
      %v324 = vmul.f32 %v296, %v309
      %v325 = vmul.f32 %v297, %v314
      %v326 = vmul.f32 %v298, %v314
      %v327 = vmul.f32 %v299, %v319
      %v328 = vmul.f32 %v300, %v319
      %330 = vset.pattern.permute.xlu0 0
      %331 = vperm.xlu0 %330, %v281
      %v332 = vpop.permute.xlu0 %331
      %335 = vset.pattern.permute.xlu0 0
      %336 = vperm.xlu0 %335, %v282
      %v337 = vpop.permute.xlu0 %336
      %340 = vset.pattern.permute.xlu0 0
      %341 = vperm.xlu0 %340, %v283
      %v342 = vpop.permute.xlu0 %341
      %345 = vset.pattern.permute.xlu0 0
      %346 = vperm.xlu0 %345, %v284
      %v347 = vpop.permute.xlu0 %346
      %v349 = vadd.f32 %v321, %v332
      %v350 = vadd.f32 %v322, %v332
      %v351 = vadd.f32 %v323, %v337
      %v352 = vadd.f32 %v324, %v337
      %v353 = vadd.f32 %v325, %v342
      %v354 = vadd.f32 %v326, %v342
      %v355 = vadd.f32 %v327, %v347
      %v356 = vadd.f32 %v328, %v347
      %357 = vst [vmem:[%s208] sm:$0xff] %v349
      %358 = vst [vmem:[%s208 + $0x8] sm:$0xff] %v350
      %359 = vst [vmem:[%s208 + $0x10] sm:$0xff] %v351
      %360 = vst [vmem:[%s208 + $0x18] sm:$0xff] %v352
      %361 = vst [vmem:[%s208 + $0x20] sm:$0xff] %v353
      %362 = vst [vmem:[%s208 + $0x28] sm:$0xff] %v354
      %363 = vst [vmem:[%s208 + $0x30] sm:$0xff] %v355
      %364 = vst [vmem:[%s208 + $0x38] sm:$0xff] %v356
      %s365 = smul.u32 2, %s19
      %p366 = scmp.lt.s32.totalorder %s18, 1
      %s367 = scalar_select %p366, %s18, 1
      %p368 = scmp.lt.s32.totalorder %s365, 1
      %s369 = scalar_select %p368, %s365, 1
      %s370 = smul.addr %s367, 8
      %s371 = sadd.s32 %s369, %s370
      %s372 = smul.addr %s371, 8
      %s373 = scalar_lea.vmem %s3, %s372
      // Predicated region
      $region33: #{layernorm_nchw.1} parent=31 // pred_check
        %p374 = pneg %p116
      $region34: #{layernorm_nchw.1} parent=31 // pred_check_branch
        %376 = sbr.rel (%p374) target = $region36
      $region35: #{layernorm_nchw.1} parent=31 // pred_region
        %s377 = smul.u32 2, %s19
      $region36: #{layernorm_nchw.1} parent=31 // pred_fallthru
        _
    $region32: #{layernorm_nchw.1} parent=5 // pred_fallthru
      _
    %p378 = scmp.le.s32.totalorder 2, %s9
    // Predicated region
    $region37: #{layernorm_nchw.1} parent=5 // pred_check
      %p379 = pneg %p378
    $region38: #{layernorm_nchw.1} parent=5 // pred_check_branch
      %381 = sbr.rel (%p379) target = $region40
    $region39: #{layernorm_nchw.1} parent=5 // pred_region
      %s382 = ssub.s32 %s9, 2
      // Predicated region
      $region41: #{layernorm_nchw.1} parent=39 // pred_check
        %p383 = pneg %p122
      $region42: #{layernorm_nchw.1} parent=39 // pred_check_branch
        %385 = sbr.rel (%p383) target = $region44
      $region43: #{layernorm_nchw.1} parent=39 // pred_region
        %s386 = smul.u32 2, %s21
        %p387 = scmp.lt.s32.totalorder %s20, 1
        %s388 = scalar_select %p387, %s20, 1
        %p389 = scmp.lt.s32.totalorder %s386, 1
        %s390 = scalar_select %p389, %s386, 1
        %s391 = smul.addr %s388, 8
        %s392 = sadd.s32 %s390, %s391
        %s393 = smul.addr %s392, 8
        %s394 = scalar_lea.vmem %s3, %s393
      $region44: #{layernorm_nchw.1} parent=39 // pred_fallthru
        _
    $region40: #{layernorm_nchw.1} parent=5 // pred_fallthru
      _
  $region6: #{layernorm_nchw.1} parent=0 // loop_footer
    %s13 = sadd.s32 1, %s9
  $region7: #{layernorm_nchw.1} parent=0 // loop_footer_branch
    %8 = sbr.rel target = $region3
  $region8: #{layernorm_nchw.1} parent=0 // loop_exit
    _

</llo_original>
